<compile_context>
chip_gen: v5e
topology: v5e:2x2
jax: 0.10.0
libtpu: 0.0.40
codegen_flags: <defaults>
</compile_context>

<pallas_src>
import functools
import numpy as np

import jax
import jax.numpy as jnp
from jax.experimental import pallas as pl
from jax.experimental.pallas import tpu as pltpu


def _choose_batch_tile(batch, seq_len, d_model, target_rows=256,
                       max_live_bytes=8 << 20):
    """Pick a batch tile: divisor of `batch`, rows multiple of 8 (sublane tile)
    unless it covers the whole batch, aiming for >= target_rows rows per grid
    step (fills the MXU M dimension) while keeping live f32 buffers bounded."""
    def legal(bt):
        return batch % bt == 0 and (bt == batch or (bt * seq_len) % 8 == 0)

    def live_bytes(bt):
        rows = bt * seq_len
        # dominant per-step live f32 values: x/res/y (~rows*E*3), qkv (rows*3D),
        # ctx/out (rows*D*2), scores+attn (2*Bt*D*D)
        return 4 * (3 * rows * 3 * d_model + 2 * bt * d_model * d_model)

    cands = [bt for bt in range(1, batch + 1) if legal(bt)]
    fitting = [bt for bt in cands if live_bytes(bt) <= max_live_bytes] or cands[:1]
    for bt in fitting:
        if bt * seq_len >= target_rows:
            return bt
    return fitting[-1]


def _attention_kernel(x_ref, wqkv_ref, bqkv_ref, wo_ref, bo_ref,
                      gamma_ref, beta_ref, out_ref, attn_ref,
                      *, batch_tile, seq_len, d_model, scale_factor, eps):
    S, D = seq_len, d_model
    x = x_ref[...]                                          # (Bt*S, E)

    # Fused QKV projection: one MXU matmul over all Bt*S rows.
    qkv = jnp.dot(x, wqkv_ref[...],
                  preferred_element_type=jnp.float32) + bqkv_ref[...]   # (Bt*S, 3D)
    q = qkv[:, :D]
    k = qkv[:, D:2 * D]
    v = qkv[:, 2 * D:]

    # Per-batch channel-attention scores, contracted over S:
    #   scores[b, i, j] = sum_s q[b*S + s, i] * k[b*S + s, j]
    # Small static loop; each 2-D dot_general (contract axis 0 of both) is a
    # single transposed MXU matmul.  Sublane-aligned slices (S multiple of 8).
    scores_blocks = []
    for b in range(batch_tile):
        lo = b * S
        scores_blocks.append(jax.lax.dot_general(
            q[lo:lo + S], k[lo:lo + S], (((0,), (0,)), ((), ())),
            preferred_element_type=jnp.float32))            # (D, D)
    scores = jnp.stack(scores_blocks, axis=0)               # (Bt, D, D)

    # One batched softmax over the whole stack; the divide-by-row-sum and the
    # divide-by-scale_factor are folded into a single exact reciprocal:
    #   (e / sum) / sf == e * reciprocal(sum * sf)
    m = jnp.max(scores, axis=-1, keepdims=True)
    e = jnp.exp(scores - m)
    inv = pl.reciprocal(jnp.sum(e, axis=-1, keepdims=True) * scale_factor,
                        approx=False)
    attn = e * inv                                          # (Bt, D, D)
    attn_ref[...] = attn.astype(attn_ref.dtype)             # single whole-tile store

    # ctx[b*S + s, i] = sum_j attn[b, i, j] * v[b*S + s, j]
    ctx_blocks = []
    for b in range(batch_tile):
        lo = b * S
        ctx_blocks.append(jax.lax.dot_general(
            v[lo:lo + S], attn[b], (((1,), (1,)), ((), ())),
            preferred_element_type=jnp.float32))            # (S, D)
    ctx = jnp.concatenate(ctx_blocks, axis=0) if batch_tile > 1 else ctx_blocks[0]

    # Output projection over all rows at once: (Bt*S, D) @ (D, E) + bo.
    out = jnp.dot(ctx, wo_ref[...],
                  preferred_element_type=jnp.float32) + bo_ref[...]      # (Bt*S, E)

    # Residual + LayerNorm over E.
    res = x + out
    mean = jnp.mean(res, axis=-1, keepdims=True)
    var = jnp.mean(jnp.square(res - mean), axis=-1, keepdims=True)
    y = (res - mean) * jax.lax.rsqrt(var + eps) * gamma_ref[...] + beta_ref[...]

    out_ref[...] = y.astype(out_ref.dtype)


def attention_layer(x, params, *, embedding_dim, heads=1, eps=1e-5,
                    batch_tile=None):
    """x: (B, S, E) float32.  Returns (output (B,S,E), attention_weights (B,D,D))."""
    B, S, E = x.shape
    D = heads * embedding_dim
    assert E == embedding_dim
    scale_factor = 1.0 / np.sqrt(embedding_dim)

    wq, bq, wk, bk, wv, bv, wo, bo, gamma, beta = params

    # Fuse QKV weights/biases; pre-transpose so in-kernel matmuls are plain A@B.
    wqkv_t = jnp.concatenate([wq, wk, wv], axis=0).T        # (E, 3D)
    bqkv = jnp.concatenate([bq, bk, bv], axis=0).reshape(1, 3 * D)
    wo_t = wo.T                                             # (D, E)
    bo = bo.reshape(1, E)
    gamma = gamma.reshape(1, E)
    beta = beta.reshape(1, E)

    if batch_tile is None:
        batch_tile = _choose_batch_tile(B, S, D)
    assert B % batch_tile == 0
    grid = B // batch_tile
    rows = batch_tile * S

    # Flatten batch*seq in the wrapper (free XLA reshape) so the kernel sees a
    # lane-dense 2-D row slab.
    x2 = x.reshape(B * S, E)

    kernel = functools.partial(_attention_kernel,
                               batch_tile=batch_tile, seq_len=S, d_model=D,
                               scale_factor=scale_factor, eps=eps)

    # Grid-invariant (weight / bias / LN-param) blocks: constant index map,
    # so Pallas only DMAs them once.
    inv_spec = lambda shape: pl.BlockSpec(shape, lambda i: tuple(0 for _ in shape))

    cost = pl.CostEstimate(
        flops=int(2 * B * S * E * 3 * D      # qkv projection
                  + 2 * B * D * D * S        # scores
                  + 2 * B * S * D * D        # attn @ v
                  + 2 * B * S * D * E),      # output projection
        transcendentals=int(B * D * D),      # softmax exp
        bytes_accessed=int(4 * (2 * B * S * E + B * D * D
                                + E * 3 * D + 3 * D + D * E + 4 * E)))

    y2, attn = pl.pallas_call(
        kernel,
        out_shape=(
            jax.ShapeDtypeStruct((B * S, E), jnp.float32),
            jax.ShapeDtypeStruct((B, D, D), jnp.float32),
        ),
        grid_spec=pltpu.PrefetchScalarGridSpec(
            num_scalar_prefetch=0,
            grid=(grid,),
            in_specs=[
                pl.BlockSpec((rows, E), lambda i: (i, 0)),   # x rows
                inv_spec((E, 3 * D)), inv_spec((1, 3 * D)),  # Wqkv^T, bqkv
                inv_spec((D, E)), inv_spec((1, E)),          # Wo^T, bo
                inv_spec((1, E)), inv_spec((1, E)),          # gamma, beta
            ],
            out_specs=[
                pl.BlockSpec((rows, E), lambda i: (i, 0)),
                pl.BlockSpec((batch_tile, D, D), lambda i: (i, 0, 0)),
            ],
        ),
        compiler_params=pltpu.CompilerParams(
            dimension_semantics=("parallel",),
            vmem_limit_bytes=32 * 1024 * 1024),
        cost_estimate=cost,
    )(x2, wqkv_t, bqkv, wo_t, bo, gamma, beta)

    # TODO(synk): for E >= 128, present a lane-dense (B*S*E/128, 128) out_spec
    # instead of (rows, E) to avoid masked partial stores when E < 128.
    return y2.reshape(B, S, E), attn


def _reference(x, params, *, embedding_dim, heads=1, eps=1e-5):
    """Pure-JAX reference mirroring the PyTorch forward (mask=None)."""
    wq, bq, wk, bk, wv, bv, wo, bo, gamma, beta = params
    scale = 1.0 / np.sqrt(embedding_dim)
    q = jnp.einsum('bse,de->bsd', x, wq) + bq
    k = jnp.einsum('bse,de->bsd', x, wk) + bk
    v = jnp.einsum('bse,de->bsd', x, wv) + bv
    scores = jnp.einsum('bsi,bsj->bij', q, k)                 # (B, D, D)
    attn = jax.nn.softmax(scores, axis=-1) / scale
    ctx = jnp.einsum('bij,bsj->bsi', attn, v)                 # (B, S, D)
    out = jnp.einsum('bsd,ed->bse', ctx, wo) + bo
    res = x + out
    mean = jnp.mean(res, axis=-1, keepdims=True)
    var = jnp.mean((res - mean) ** 2, axis=-1, keepdims=True)
    y = (res - mean) / jnp.sqrt(var + eps) * gamma + beta
    return y, attn


def init_params(key, embedding_dim, heads=1):
    E = embedding_dim
    D = heads * E
    std = np.sqrt(2.0 / (E + D))
    ks = jax.random.split(key, 8)
    wq = std * jax.random.normal(ks[0], (D, E), jnp.float32)
    wk = std * jax.random.normal(ks[1], (D, E), jnp.float32)
    wv = std * jax.random.normal(ks[2], (D, E), jnp.float32)
    bq = 0.01 * jax.random.normal(ks[3], (D,), jnp.float32)
    bk = 0.01 * jax.random.normal(ks[4], (D,), jnp.float32)
    bv = 0.01 * jax.random.normal(ks[5], (D,), jnp.float32)
    wo = (1.0 / np.sqrt(D)) * jax.random.normal(ks[6], (E, D), jnp.float32)
    bo = 0.01 * jax.random.normal(ks[7], (E,), jnp.float32)
    gamma = jnp.ones((E,), jnp.float32)
    beta = jnp.zeros((E,), jnp.float32)
    return (wq, bq, wk, bk, wv, bv, wo, bo, gamma, beta)


if __name__ == "__main__":
    B, S, E, heads = 2, 8, 32, 1
    key = jax.random.PRNGKey(0)
    kx, kp = jax.random.split(key)
    x = jax.random.normal(kx, (B, S, E), jnp.float32)
    params = init_params(kp, E, heads)

    out, attn = attention_layer(x, params, embedding_dim=E, heads=heads)
    out, attn = jax.block_until_ready((out, attn))

    ref_out, ref_attn = _reference(x, params, embedding_dim=E, heads=heads)
    np.testing.assert_allclose(np.asarray(out), np.asarray(ref_out),
                               rtol=1e-5, atol=1e-5)
    np.testing.assert_allclose(np.asarray(attn), np.asarray(ref_attn),
                               rtol=1e-5, atol=1e-5)

    print("KERNEL_OK")
</pallas_src>

<mosaic_0001>
module attributes {stable_mosaic.version = 11 : i64} {
  func.func @_attention_kernel(%arg0: i32, %arg1: memref<16x32xf32, #tpu.memory_space<vmem>>, %arg2: memref<32x96xf32, #tpu.memory_space<vmem>>, %arg3: memref<1x96xf32, #tpu.memory_space<vmem>>, %arg4: memref<32x32xf32, #tpu.memory_space<vmem>>, %arg5: memref<1x32xf32, #tpu.memory_space<vmem>>, %arg6: memref<1x32xf32, #tpu.memory_space<vmem>>, %arg7: memref<1x32xf32, #tpu.memory_space<vmem>>, %arg8: memref<16x32xf32, #tpu.memory_space<vmem>>, %arg9: memref<2x32x32xf32, #tpu.memory_space<vmem>>) attributes {dimension_semantics = [#tpu.dimension_semantics<parallel>], iteration_bounds = array<i64: 1>, scalar_prefetch = 0 : i64, scratch_operands = 0 : i64, tpu.core_type = #tpu.core_type<tc>, window_params = [{transform_indices = @transform_0, window_bounds = array<i64: 16, 32>}, {pipeline_mode = #tpu.pipeline_mode<synchronous>, transform_indices = @transform_1, window_bounds = array<i64: 32, 96>}, {pipeline_mode = #tpu.pipeline_mode<synchronous>, transform_indices = @transform_2, window_bounds = array<i64: 1, 96>}, {pipeline_mode = #tpu.pipeline_mode<synchronous>, transform_indices = @transform_3, window_bounds = array<i64: 32, 32>}, {pipeline_mode = #tpu.pipeline_mode<synchronous>, transform_indices = @transform_4, window_bounds = array<i64: 1, 32>}, {pipeline_mode = #tpu.pipeline_mode<synchronous>, transform_indices = @transform_5, window_bounds = array<i64: 1, 32>}, {pipeline_mode = #tpu.pipeline_mode<synchronous>, transform_indices = @transform_6, window_bounds = array<i64: 1, 32>}, {transform_indices = @transform_7, window_bounds = array<i64: 16, 32>}, {transform_indices = @transform_8, window_bounds = array<i64: 2, 32, 32>}]} {
    %c0 = arith.constant 0 : index
    %c0_0 = arith.constant 0 : index
    %0 = vector.load %arg1[%c0, %c0_0] : memref<16x32xf32, #tpu.memory_space<vmem>>, vector<16x32xf32>
    %c0_1 = arith.constant 0 : index
    %c0_2 = arith.constant 0 : index
    %1 = vector.load %arg2[%c0_1, %c0_2] : memref<32x96xf32, #tpu.memory_space<vmem>>, vector<32x96xf32>
    %cst = arith.constant dense<0.000000e+00> : vector<16x96xf32>
    %2 = tpu.matmul %0, %1, %cst {dimension_numbers = #tpu.dot_dimension_numbers<[1], [0], [0], [1], [0, 0, 1, 1], [], []>} : vector<16x32xf32>, vector<32x96xf32>, vector<16x96xf32> -> vector<16x96xf32>
    %c0_3 = arith.constant 0 : index
    %c0_4 = arith.constant 0 : index
    %3 = vector.load %arg3[%c0_3, %c0_4] : memref<1x96xf32, #tpu.memory_space<vmem>>, vector<1x96xf32>
    %4 = vector.broadcast %3 : vector<1x96xf32> to vector<16x96xf32>
    %5 = arith.addf %2, %4 : vector<16x96xf32>
    %6 = vector.extract_strided_slice %5 {offsets = [0, 0], sizes = [16, 32], strides = [1, 1]} : vector<16x96xf32> to vector<16x32xf32>
    %7 = vector.extract_strided_slice %5 {offsets = [0, 32], sizes = [16, 32], strides = [1, 1]} : vector<16x96xf32> to vector<16x32xf32>
    %8 = vector.extract_strided_slice %5 {offsets = [0, 64], sizes = [16, 32], strides = [1, 1]} : vector<16x96xf32> to vector<16x32xf32>
    %9 = vector.extract_strided_slice %6 {offsets = [0, 0], sizes = [8, 32], strides = [1, 1]} : vector<16x32xf32> to vector<8x32xf32>
    %10 = vector.extract_strided_slice %7 {offsets = [0, 0], sizes = [8, 32], strides = [1, 1]} : vector<16x32xf32> to vector<8x32xf32>
    %cst_5 = arith.constant dense<0.000000e+00> : vector<32x32xf32>
    %11 = tpu.matmul %9, %10, %cst_5 {dimension_numbers = #tpu.dot_dimension_numbers<[0], [0], [1], [1], [0, 1, 1, 1], [], []>} : vector<8x32xf32>, vector<8x32xf32>, vector<32x32xf32> -> vector<32x32xf32>
    %12 = vector.extract_strided_slice %6 {offsets = [8, 0], sizes = [8, 32], strides = [1, 1]} : vector<16x32xf32> to vector<8x32xf32>
    %13 = vector.extract_strided_slice %7 {offsets = [8, 0], sizes = [8, 32], strides = [1, 1]} : vector<16x32xf32> to vector<8x32xf32>
    %cst_6 = arith.constant dense<0.000000e+00> : vector<32x32xf32>
    %14 = tpu.matmul %12, %13, %cst_6 {dimension_numbers = #tpu.dot_dimension_numbers<[0], [0], [1], [1], [0, 1, 1, 1], [], []>} : vector<8x32xf32>, vector<8x32xf32>, vector<32x32xf32> -> vector<32x32xf32>
    %15 = vector.shape_cast %11 : vector<32x32xf32> to vector<1x32x32xf32>
    %16 = vector.shape_cast %14 : vector<32x32xf32> to vector<1x32x32xf32>
    %17 = tpu.concatenate %15, %16 in 0 : vector<1x32x32xf32>, vector<1x32x32xf32> -> vector<2x32x32xf32>
    %cst_7 = arith.constant dense<0xFF800000> : vector<2x32xf32>
    %18 = vector.multi_reduction <maximumf>, %17, %cst_7 [2] : vector<2x32x32xf32> to vector<2x32xf32>
    %19 = vector.shape_cast %18 : vector<2x32xf32> to vector<2x32x1xf32>
    %20 = vector.broadcast %19 : vector<2x32x1xf32> to vector<2x32x32xf32>
    %21 = arith.subf %17, %20 : vector<2x32x32xf32>
    %22 = math.exp %21 : vector<2x32x32xf32>
    %cst_8 = arith.constant dense<0.000000e+00> : vector<2x32xf32>
    %23 = vector.multi_reduction <add>, %22, %cst_8 [2] : vector<2x32x32xf32> to vector<2x32xf32>
    %24 = vector.shape_cast %23 : vector<2x32xf32> to vector<2x32x1xf32>
    %cst_9 = arith.constant 0.176776692 : f32
    %25 = vector.broadcast %cst_9 : f32 to vector<2x32x1xf32>
    %26 = arith.mulf %24, %25 : vector<2x32x1xf32>
    %27 = tpu.reciprocal %26 : vector<2x32x1xf32> -> vector<2x32x1xf32>
    %28 = vector.broadcast %27 : vector<2x32x1xf32> to vector<2x32x32xf32>
    %29 = arith.mulf %22, %28 : vector<2x32x32xf32>
    %c0_10 = arith.constant 0 : index
    %c0_11 = arith.constant 0 : index
    %c0_12 = arith.constant 0 : index
    %30 = vector.load %arg9[%c0_10, %c0_11, %c0_12] : memref<2x32x32xf32, #tpu.memory_space<vmem>>, vector<2x32x32xf32>
    tpu.vector_store %arg9[%c0_10, %c0_11, %c0_12], %29 {strides = array<i32>} : memref<2x32x32xf32, #tpu.memory_space<vmem>>, vector<2x32x32xf32>,
    %31 = vector.extract_strided_slice %8 {offsets = [0, 0], sizes = [8, 32], strides = [1, 1]} : vector<16x32xf32> to vector<8x32xf32>
    %32 = vector.extract_strided_slice %29 {offsets = [0, 0, 0], sizes = [1, 32, 32], strides = [1, 1, 1]} : vector<2x32x32xf32> to vector<1x32x32xf32>
    %33 = vector.shape_cast %32 : vector<1x32x32xf32> to vector<32x32xf32>
    %cst_13 = arith.constant dense<0.000000e+00> : vector<8x32xf32>
    %34 = tpu.matmul %31, %33, %cst_13 {dimension_numbers = #tpu.dot_dimension_numbers<[1], [1], [0], [0], [0, 0, 1, 0], [], []>} : vector<8x32xf32>, vector<32x32xf32>, vector<8x32xf32> -> vector<8x32xf32>
    %35 = vector.extract_strided_slice %8 {offsets = [8, 0], sizes = [8, 32], strides = [1, 1]} : vector<16x32xf32> to vector<8x32xf32>
    %36 = vector.extract_strided_slice %29 {offsets = [1, 0, 0], sizes = [1, 32, 32], strides = [1, 1, 1]} : vector<2x32x32xf32> to vector<1x32x32xf32>
    %37 = vector.shape_cast %36 : vector<1x32x32xf32> to vector<32x32xf32>
    %cst_14 = arith.constant dense<0.000000e+00> : vector<8x32xf32>
    %38 = tpu.matmul %35, %37, %cst_14 {dimension_numbers = #tpu.dot_dimension_numbers<[1], [1], [0], [0], [0, 0, 1, 0], [], []>} : vector<8x32xf32>, vector<32x32xf32>, vector<8x32xf32> -> vector<8x32xf32>
    %39 = tpu.concatenate %34, %38 in 0 : vector<8x32xf32>, vector<8x32xf32> -> vector<16x32xf32>
    %c0_15 = arith.constant 0 : index
    %c0_16 = arith.constant 0 : index
    %40 = vector.load %arg4[%c0_15, %c0_16] : memref<32x32xf32, #tpu.memory_space<vmem>>, vector<32x32xf32>
    %cst_17 = arith.constant dense<0.000000e+00> : vector<16x32xf32>
    %41 = tpu.matmul %39, %40, %cst_17 {dimension_numbers = #tpu.dot_dimension_numbers<[1], [0], [0], [1], [0, 0, 1, 1], [], []>} : vector<16x32xf32>, vector<32x32xf32>, vector<16x32xf32> -> vector<16x32xf32>
    %c0_18 = arith.constant 0 : index
    %c0_19 = arith.constant 0 : index
    %42 = vector.load %arg5[%c0_18, %c0_19] : memref<1x32xf32, #tpu.memory_space<vmem>>, vector<1x32xf32>
    %43 = vector.broadcast %42 : vector<1x32xf32> to vector<16x32xf32>
    %44 = arith.addf %41, %43 : vector<16x32xf32>
    %45 = arith.addf %0, %44 : vector<16x32xf32>
    %cst_20 = arith.constant dense<0.000000e+00> : vector<16xf32>
    %46 = vector.multi_reduction <add>, %45, %cst_20 [1] : vector<16x32xf32> to vector<16xf32>
    %47 = vector.shape_cast %46 : vector<16xf32> to vector<16x1xf32>
    %cst_21 = arith.constant 3.200000e+01 : f32
    %48 = vector.broadcast %cst_21 : f32 to vector<16x1xf32>
    %49 = arith.divf %47, %48 : vector<16x1xf32>
    %50 = vector.broadcast %49 : vector<16x1xf32> to vector<16x32xf32>
    %51 = arith.subf %45, %50 : vector<16x32xf32>
    %52 = arith.mulf %51, %51 : vector<16x32xf32>
    %cst_22 = arith.constant dense<0.000000e+00> : vector<16xf32>
    %53 = vector.multi_reduction <add>, %52, %cst_22 [1] : vector<16x32xf32> to vector<16xf32>
    %54 = vector.shape_cast %53 : vector<16xf32> to vector<16x1xf32>
    %cst_23 = arith.constant 3.200000e+01 : f32
    %55 = vector.broadcast %cst_23 : f32 to vector<16x1xf32>
    %56 = arith.divf %54, %55 : vector<16x1xf32>
    %57 = vector.broadcast %49 : vector<16x1xf32> to vector<16x32xf32>
    %58 = arith.subf %45, %57 : vector<16x32xf32>
    %cst_24 = arith.constant 9.99999974E-6 : f32
    %59 = vector.broadcast %cst_24 : f32 to vector<16x1xf32>
    %60 = arith.addf %56, %59 : vector<16x1xf32>
    %61 = math.rsqrt %60 : vector<16x1xf32>
    %62 = vector.broadcast %61 : vector<16x1xf32> to vector<16x32xf32>
    %63 = arith.mulf %58, %62 : vector<16x32xf32>
    %c0_25 = arith.constant 0 : index
    %c0_26 = arith.constant 0 : index
    %64 = vector.load %arg6[%c0_25, %c0_26] : memref<1x32xf32, #tpu.memory_space<vmem>>, vector<1x32xf32>
    %65 = vector.broadcast %64 : vector<1x32xf32> to vector<16x32xf32>
    %66 = arith.mulf %63, %65 : vector<16x32xf32>
    %c0_27 = arith.constant 0 : index
    %c0_28 = arith.constant 0 : index
    %67 = vector.load %arg7[%c0_27, %c0_28] : memref<1x32xf32, #tpu.memory_space<vmem>>, vector<1x32xf32>
    %68 = vector.broadcast %67 : vector<1x32xf32> to vector<16x32xf32>
    %69 = arith.addf %66, %68 : vector<16x32xf32>
    %c0_29 = arith.constant 0 : index
    %c0_30 = arith.constant 0 : index
    %70 = vector.load %arg8[%c0_29, %c0_30] : memref<16x32xf32, #tpu.memory_space<vmem>>, vector<16x32xf32>
    tpu.vector_store %arg8[%c0_29, %c0_30], %69 {strides = array<i32>} : memref<16x32xf32, #tpu.memory_space<vmem>>, vector<16x32xf32>,
    return
  }
  func.func @transform_0(%arg0: i32) -> (i32, i32) {
    %c0_i32 = arith.constant 0 : i32
    %c0_i32_0 = arith.constant 0 : i32
    return %arg0, %c0_i32 : i32, i32
  }
  func.func @transform_1(%arg0: i32) -> (i32, i32) {
    %c0_i32 = arith.constant 0 : i32
    %c0_i32_0 = arith.constant 0 : i32
    %c0_i32_1 = arith.constant 0 : i32
    return %c0_i32, %c0_i32_0 : i32, i32
  }
  func.func @transform_2(%arg0: i32) -> (i32, i32) {
    %c0_i32 = arith.constant 0 : i32
    %c0_i32_0 = arith.constant 0 : i32
    %c0_i32_1 = arith.constant 0 : i32
    return %c0_i32, %c0_i32_0 : i32, i32
  }
  func.func @transform_3(%arg0: i32) -> (i32, i32) {
    %c0_i32 = arith.constant 0 : i32
    %c0_i32_0 = arith.constant 0 : i32
    %c0_i32_1 = arith.constant 0 : i32
    return %c0_i32, %c0_i32_0 : i32, i32
  }
  func.func @transform_4(%arg0: i32) -> (i32, i32) {
    %c0_i32 = arith.constant 0 : i32
    %c0_i32_0 = arith.constant 0 : i32
    %c0_i32_1 = arith.constant 0 : i32
    return %c0_i32, %c0_i32_0 : i32, i32
  }
  func.func @transform_5(%arg0: i32) -> (i32, i32) {
    %c0_i32 = arith.constant 0 : i32
    %c0_i32_0 = arith.constant 0 : i32
    %c0_i32_1 = arith.constant 0 : i32
    return %c0_i32, %c0_i32_0 : i32, i32
  }
  func.func @transform_6(%arg0: i32) -> (i32, i32) {
    %c0_i32 = arith.constant 0 : i32
    %c0_i32_0 = arith.constant 0 : i32
    %c0_i32_1 = arith.constant 0 : i32
    return %c0_i32, %c0_i32_0 : i32, i32
  }
  func.func @transform_7(%arg0: i32) -> (i32, i32) {
    %c0_i32 = arith.constant 0 : i32
    %c0_i32_0 = arith.constant 0 : i32
    return %arg0, %c0_i32 : i32, i32
  }
  func.func @transform_8(%arg0: i32) -> (i32, i32, i32) {
    %c0_i32 = arith.constant 0 : i32
    %c0_i32_0 = arith.constant 0 : i32
    %c0_i32_1 = arith.constant 0 : i32
    return %arg0, %c0_i32, %c0_i32_0 : i32, i32, i32
  }
}

</mosaic_0001>

<llo_original>
// kernel: tpu_custom_call.1
$region0: #{tpu_custom_call.1}
  #allocation0 [shape = 'u32[]', space=smem, size = 0x4, offset = 0x4, fixed_abs, tag = 'smem constant byte address 0x4 - core index']
  #allocation1 [shape = 'u32[72,128]{1,0:T(1,128)}', space=vmem, size = 0x9000, scoped, tag = 'internal scratch']
  %s0 = inlined_call_operand.hbm [shape: f32[16,32], index: 0, kind: input, shape index: {}]
  %s1 = inlined_call_operand.hbm [shape: f32[32,96], index: 1, kind: input, shape index: {}]
  %s2 = inlined_call_operand.vmem [shape: f32[1,96], index: 2, kind: input, shape index: {}]
  %s3 = inlined_call_operand.hbm [shape: f32[32,32], index: 3, kind: input, shape index: {}]
  %s4 = inlined_call_operand.vmem [shape: f32[1,32], index: 4, kind: input, shape index: {}]
  %s5 = inlined_call_operand.vmem [shape: f32[1,32], index: 5, kind: input, shape index: {}]
  %s6 = inlined_call_operand.vmem [shape: f32[1,32], index: 6, kind: input, shape index: {}]
  %s7 = inlined_call_operand.hbm [shape: f32[16,32], index: 7, kind: output, shape index: {0}]
  %s8 = inlined_call_operand.hbm [shape: f32[2,32,32], index: 8, kind: output, shape index: {1}]
  %9 = xla_tuple %s7, %s8
  %s10 = sld [smem:[#allocation0]]
  $region58: #{tpu_custom_call.1} parent=0
    _
  %s12 = ssub.s32 1, %s10
  %s13 = scalar_select 0, %s12, %s10
  $region1: #{tpu_custom_call.1} parent=0
    #allocation2 [shape = 'u8[8192]{0}', space=vmem, size = 0x2000, scoped, tag = 'input window, operand 0, single buffered']
    #allocation3 [shape = 's32[1]{0}', space=sflag, size = 0x4, scoped, tag = 'scoped memory for tpu_custom_call.1']
    #allocation4 [shape = 's32[1]{0}', space=sflag, size = 0x4, scoped, tag = 'scoped memory for tpu_custom_call.1']
    #allocation5 [shape = 'u8[16384]{0}', space=vmem, size = 0x4000, scoped, tag = 'input window, operand 1, single buffered']
    #allocation6 [shape = 's32[1]{0}', space=sflag, size = 0x4, scoped, tag = 'scoped memory for tpu_custom_call.1']
    #allocation7 [shape = 'u8[16384]{0}', space=vmem, size = 0x4000, scoped, tag = 'input window, operand 3, single buffered']
    #allocation8 [shape = 'u8[8192]{0}', space=vmem, size = 0x2000, scoped, tag = 'output window, operand 0, single buffered']
    #allocation9 [shape = 'u8[32768]{0}', space=vmem, size = 0x8000, scoped, tag = 'output window, operand 1, single buffered']
    #allocation10 [shape = 's32[1]{0}', space=sflag, size = 0x4, scoped, tag = 'scoped memory for tpu_custom_call.1']
    %14 = vsyncpa [#allocation3], 0
    %15 = vsyncpa [#allocation6], 0
    %16 = vsyncpa [#allocation4], 0
    %17 = vsyncpa [#allocation10], 0
    // Predicated region
    $region2: #{tpu_custom_call.1} parent=1 // pred_check
      _
    $region3: #{tpu_custom_call.1} parent=1 // pred_check_branch
      %19 = sbr.rel (0) target = $region5
    $region4: #{tpu_custom_call.1} parent=1 // pred_region
      %21 = vsyncadd [#allocation3], 0
      %s22 = sshll.u32 %s0, 4
      %s23 = int_to_ptr.hbm [resolvable:$true] %s22
      %s24 = sshll.u32 [#allocation2], 4
      %s25 = int_to_ptr.vmem [resolvable:$true] %s24
      %30 = dma.hbm_to_vmem [thread:$0]  %s23, 256, %s25, [#allocation3], 128, 128, 8
    $region5: #{tpu_custom_call.1} parent=1 // pred_fallthru
      _
    // Predicated region
    $region6: #{tpu_custom_call.1} parent=1 // pred_check
      _
    $region7: #{tpu_custom_call.1} parent=1 // pred_check_branch
      %32 = sbr.rel (0) target = $region9
    $region8: #{tpu_custom_call.1} parent=1 // pred_region
      %34 = vsyncadd [#allocation6], 0
      %s35 = sshll.u32 %s1, 4
      %s36 = int_to_ptr.hbm [resolvable:$true] %s35
      %s37 = sshll.u32 [#allocation5], 4
      %s38 = int_to_ptr.vmem [resolvable:$true] %s37
      %43 = dma.hbm_to_vmem [thread:$0]  %s36, 512, %s38, [#allocation6], 128, 128, 8
    $region9: #{tpu_custom_call.1} parent=1 // pred_fallthru
      _
    // Predicated region
    $region10: #{tpu_custom_call.1} parent=1 // pred_check
      _
    $region11: #{tpu_custom_call.1} parent=1 // pred_check_branch
      %45 = sbr.rel (0) target = $region13
    $region12: #{tpu_custom_call.1} parent=1 // pred_region
      _
    $region13: #{tpu_custom_call.1} parent=1 // pred_fallthru
      _
    // Predicated region
    $region14: #{tpu_custom_call.1} parent=1 // pred_check
      _
    $region15: #{tpu_custom_call.1} parent=1 // pred_check_branch
      %47 = sbr.rel (0) target = $region17
    $region16: #{tpu_custom_call.1} parent=1 // pred_region
      %49 = vsyncadd [#allocation6], 0
      %s50 = sshll.u32 %s3, 4
      %s51 = int_to_ptr.hbm [resolvable:$true] %s50
      %s52 = sshll.u32 [#allocation7], 4
      %s53 = int_to_ptr.vmem [resolvable:$true] %s52
      %58 = dma.hbm_to_vmem [thread:$0]  %s51, 512, %s53, [#allocation6], 128, 128, 8
    $region17: #{tpu_custom_call.1} parent=1 // pred_fallthru
      _
    // Predicated region
    $region18: #{tpu_custom_call.1} parent=1 // pred_check
      _
    $region19: #{tpu_custom_call.1} parent=1 // pred_check_branch
      %60 = sbr.rel (0) target = $region21
    $region20: #{tpu_custom_call.1} parent=1 // pred_region
      _
    $region21: #{tpu_custom_call.1} parent=1 // pred_fallthru
      _
    // Predicated region
    $region22: #{tpu_custom_call.1} parent=1 // pred_check
      _
    $region23: #{tpu_custom_call.1} parent=1 // pred_check_branch
      %62 = sbr.rel (0) target = $region25
    $region24: #{tpu_custom_call.1} parent=1 // pred_region
      _
    $region25: #{tpu_custom_call.1} parent=1 // pred_fallthru
      _
    // Predicated region
    $region26: #{tpu_custom_call.1} parent=1 // pred_check
      _
    $region27: #{tpu_custom_call.1} parent=1 // pred_check_branch
      %64 = sbr.rel (0) target = $region29
    $region28: #{tpu_custom_call.1} parent=1 // pred_region
      _
    $region29: #{tpu_custom_call.1} parent=1 // pred_fallthru
      _
    // Predicated region
    $region30: #{tpu_custom_call.1} parent=1 // pred_check
      _
    $region31: #{tpu_custom_call.1} parent=1 // pred_check_branch
      %66 = sbr.rel (0) target = $region33
    $region32: #{tpu_custom_call.1} parent=1 // pred_region
      %68 = dma.done [#allocation3], 256
    $region33: #{tpu_custom_call.1} parent=1 // pred_fallthru
      _
    // Predicated region
    $region34: #{tpu_custom_call.1} parent=1 // pred_check
      _
    $region35: #{tpu_custom_call.1} parent=1 // pred_check_branch
      %70 = sbr.rel (0) target = $region37
    $region36: #{tpu_custom_call.1} parent=1 // pred_region
      %72 = dma.done [#allocation6], 512
    $region37: #{tpu_custom_call.1} parent=1 // pred_fallthru
      _
    // Predicated region
    $region38: #{tpu_custom_call.1} parent=1 // pred_check
      _
    $region39: #{tpu_custom_call.1} parent=1 // pred_check_branch
      %74 = sbr.rel (0) target = $region41
    $region40: #{tpu_custom_call.1} parent=1 // pred_region
      %76 = dma.done [#allocation6], 512
    $region41: #{tpu_custom_call.1} parent=1 // pred_fallthru
      _
    %v77 = vld [vmem:[#allocation2] sm:$0xff]
    %v78 = vld [vmem:[#allocation2 + $0x8] sm:$0xff]
    %v79 = vld [vmem:[#allocation5] sm:$0xff]
    %v80 = vld [vmem:[#allocation5 + $0x8] sm:$0xff]
    %v81 = vld [vmem:[#allocation5 + $0x10] sm:$0xff]
    %v82 = vld [vmem:[#allocation5 + $0x18] sm:$0xff]
    %v83 = vld [vmem:[%s2] sm:$0x1]
    %v85 = vperm.slane %v83, 0
    %vm87 = vcmask 261120
    %v89 = vsel %vm87, %v77, 0
    %v92 = vsel %vm87, %v78, 0
    %94 = vmatpush.msra.mxu0 0.0
    %95 = vmatpush.msra.mxu0 0.0
    %96 = vmatpush.msra.mxu0 0.0
    %97 = vmatpush.msra.mxu0 0.0
    %98 = vmatpush.msra.mxu0 0.0
    %99 = vmatpush.msra.mxu0 0.0
    %100 = vmatpush.msra.mxu0 0.0
    %101 = vmatpush.msra.mxu0 0.0
    %102 = vmatpush.msra.mxu0 0.0
    %103 = vmatpush.msra.mxu0 0.0
    %104 = vmatpush.msra.mxu0 0.0
    %105 = vmatpush.msra.mxu0 0.0
    %106 = vmatpush.msra.mxu0 %v82
    %107 = vmatpush.msra.mxu0 %v81
    %108 = vmatpush.msra.mxu0 %v80
    %109 = vmatpush.msra.mxu0 %v79
    %110 = vmatmul.f32.gmra.mxu0 %v89
    %v111 = vpop.f32.mrf.mxu0
    %v112 = vadd.f32 %v85, %v111
    %113 = vmatmul.f32.gmra.mxu0 %v92
    %v114 = vpop.f32.mrf.mxu0
    %v115 = vadd.f32 %v85, %v114
    %116 = vdwg.mxu0
    %117 = vxpose.xlu0.b32.start [1/16] %v112, 128
    %118 = vxpose.xlu0.b32.cont [2/16] 0.0, 128
    %119 = vxpose.xlu0.b32.cont [3/16] 0.0, 128
    %120 = vxpose.xlu0.b32.cont [4/16] 0.0, 128
    %121 = vxpose.xlu0.b32.cont [5/16] 0.0, 128
    %122 = vxpose.xlu0.b32.cont [6/16] 0.0, 128
    %123 = vxpose.xlu0.b32.cont [7/16] 0.0, 128
    %124 = vxpose.xlu0.b32.cont [8/16] 0.0, 128
    %125 = vxpose.xlu0.b32.cont [9/16] 0.0, 128
    %126 = vxpose.xlu0.b32.cont [10/16] 0.0, 128
    %127 = vxpose.xlu0.b32.cont [11/16] 0.0, 128
    %128 = vxpose.xlu0.b32.cont [12/16] 0.0, 128
    %129 = vxpose.xlu0.b32.cont [13/16] 0.0, 128
    %130 = vxpose.xlu0.b32.cont [14/16] 0.0, 128
    %131 = vxpose.xlu0.b32.cont [15/16] 0.0, 128
    %132 = vxpose.xlu0.b32.end [16/16] 0.0, 128
    %v133 = vpop.trf.xlu0
    %v134 = vpop.trf.xlu0
    %v135 = vpop.trf.xlu0
    %v136 = vpop.trf.xlu0
    %v137 = vpop.trf.xlu0
    %v138 = vpop.trf.xlu0
    %v139 = vpop.trf.xlu0
    %v140 = vpop.trf.xlu0
    %v141 = vpop.trf.xlu0
    %v142 = vpop.trf.xlu0
    %v143 = vpop.trf.xlu0
    %v144 = vpop.trf.xlu0
    %v145 = vpop.trf.xlu0
    %v146 = vpop.trf.xlu0
    %v147 = vpop.trf.xlu0
    %v148 = vpop.trf.xlu0
    %150 = vrot.lane.b32.xlu0 %v112, 96
    %v151 = vpop.permute.xlu0 %150
    %vm153 = vcmask 64512
    %v155 = vsel %vm153, %v133, 0
    %v158 = vsel %vm153, %v134, 0
    %v161 = vsel %vm153, %v135, 0
    %v164 = vsel %vm153, %v136, 0
    %166 = vmatpush.msra.mxu0 0.0
    %167 = vmatpush.msra.mxu0 0.0
    %168 = vmatpush.msra.mxu0 0.0
    %169 = vmatpush.msra.mxu0 0.0
    %170 = vmatpush.msra.mxu0 0.0
    %171 = vmatpush.msra.mxu0 0.0
    %172 = vmatpush.msra.mxu0 0.0
    %173 = vmatpush.msra.mxu0 0.0
    %174 = vmatpush.msra.mxu0 0.0
    %175 = vmatpush.msra.mxu0 0.0
    %176 = vmatpush.msra.mxu0 0.0
    %177 = vmatpush.msra.mxu0 0.0
    %178 = vmatpush.msra.mxu0 0.0
    %179 = vmatpush.msra.mxu0 0.0
    %180 = vmatpush.msra.mxu0 0.0
    %181 = vmatpush.msra.mxu0 %v151
    %182 = vmatmul.f32.gmra.mxu0 %v155
    %v183 = vpop.f32.mrf.mxu0
    %v184 = vadd.f32 0.0, %v183
    %185 = vmatmul.f32.gmra.mxu0 %v158
    %v186 = vpop.f32.mrf.mxu0
    %v187 = vadd.f32 0.0, %v186
    %188 = vmatmul.f32.gmra.mxu0 %v161
    %v189 = vpop.f32.mrf.mxu0
    %v190 = vadd.f32 0.0, %v189
    %191 = vmatmul.f32.gmra.mxu0 %v164
    %v192 = vpop.f32.mrf.mxu0
    %v193 = vadd.f32 0.0, %v192
    %194 = vdwg.mxu0
    %195 = vxpose.xlu0.b32.start [1/16] %v115, 128
    %196 = vxpose.xlu0.b32.cont [2/16] 0.0, 128
    %197 = vxpose.xlu0.b32.cont [3/16] 0.0, 128
    %198 = vxpose.xlu0.b32.cont [4/16] 0.0, 128
    %199 = vxpose.xlu0.b32.cont [5/16] 0.0, 128
    %200 = vxpose.xlu0.b32.cont [6/16] 0.0, 128
    %201 = vxpose.xlu0.b32.cont [7/16] 0.0, 128
    %202 = vxpose.xlu0.b32.cont [8/16] 0.0, 128
    %203 = vxpose.xlu0.b32.cont [9/16] 0.0, 128
    %204 = vxpose.xlu0.b32.cont [10/16] 0.0, 128
    %205 = vxpose.xlu0.b32.cont [11/16] 0.0, 128
    %206 = vxpose.xlu0.b32.cont [12/16] 0.0, 128
    %207 = vxpose.xlu0.b32.cont [13/16] 0.0, 128
    %208 = vxpose.xlu0.b32.cont [14/16] 0.0, 128
    %209 = vxpose.xlu0.b32.cont [15/16] 0.0, 128
    %210 = vxpose.xlu0.b32.end [16/16] 0.0, 128
    %v211 = vpop.trf.xlu0
    %v212 = vpop.trf.xlu0
    %v213 = vpop.trf.xlu0
    %v214 = vpop.trf.xlu0
    %v215 = vpop.trf.xlu0
    %v216 = vpop.trf.xlu0
    %v217 = vpop.trf.xlu0
    %v218 = vpop.trf.xlu0
    %v219 = vpop.trf.xlu0
    %v220 = vpop.trf.xlu0
    %v221 = vpop.trf.xlu0
    %v222 = vpop.trf.xlu0
    %v223 = vpop.trf.xlu0
    %v224 = vpop.trf.xlu0
    %v225 = vpop.trf.xlu0
    %v226 = vpop.trf.xlu0
    %228 = vrot.lane.b32.xlu0 %v115, 96
    %v229 = vpop.permute.xlu0 %228
    %v232 = vsel %vm153, %v211, 0
    %v235 = vsel %vm153, %v212, 0
    %v238 = vsel %vm153, %v213, 0
    %v241 = vsel %vm153, %v214, 0
    %243 = vmatpush.msra.mxu0 0.0
    %244 = vmatpush.msra.mxu0 0.0
    %245 = vmatpush.msra.mxu0 0.0
    %246 = vmatpush.msra.mxu0 0.0
    %247 = vmatpush.msra.mxu0 0.0
    %248 = vmatpush.msra.mxu0 0.0
    %249 = vmatpush.msra.mxu0 0.0
    %250 = vmatpush.msra.mxu0 0.0
    %251 = vmatpush.msra.mxu0 0.0
    %252 = vmatpush.msra.mxu0 0.0
    %253 = vmatpush.msra.mxu0 0.0
    %254 = vmatpush.msra.mxu0 0.0
    %255 = vmatpush.msra.mxu0 0.0
    %256 = vmatpush.msra.mxu0 0.0
    %257 = vmatpush.msra.mxu0 0.0
    %258 = vmatpush.msra.mxu0 %v229
    %259 = vmatmul.f32.gmra.mxu0 %v232
    %v260 = vpop.f32.mrf.mxu0
    %v261 = vadd.f32 0.0, %v260
    %262 = vmatmul.f32.gmra.mxu0 %v235
    %v263 = vpop.f32.mrf.mxu0
    %v264 = vadd.f32 0.0, %v263
    %265 = vmatmul.f32.gmra.mxu0 %v238
    %v266 = vpop.f32.mrf.mxu0
    %v267 = vadd.f32 0.0, %v266
    %268 = vmatmul.f32.gmra.mxu0 %v241
    %v269 = vpop.f32.mrf.mxu0
    %v270 = vadd.f32 0.0, %v269
    %271 = vdwg.mxu0
    %v272 = vsel %vm87, %v184, -inf
    %273 = vmax.xlane.f32.xlu0 %v272
    %v274 = vpop.xlane.xlu0 %273
    %v275 = vsel %vm87, %v187, -inf
    %276 = vmax.xlane.f32.xlu0 %v275
    %v277 = vpop.xlane.xlu0 %276
    %v278 = vsel %vm87, %v190, -inf
    %279 = vmax.xlane.f32.xlu0 %v278
    %v280 = vpop.xlane.xlu0 %279
    %v281 = vsel %vm87, %v193, -inf
    %282 = vmax.xlane.f32.xlu0 %v281
    %v283 = vpop.xlane.xlu0 %282
    %v284 = vsel %vm87, %v261, -inf
    %285 = vmax.xlane.f32.xlu0 %v284
    %v286 = vpop.xlane.xlu0 %285
    %v287 = vsel %vm87, %v264, -inf
    %288 = vmax.xlane.f32.xlu0 %v287
    %v289 = vpop.xlane.xlu0 %288
    %v290 = vsel %vm87, %v267, -inf
    %291 = vmax.xlane.f32.xlu0 %v290
    %v292 = vpop.xlane.xlu0 %291
    %v293 = vsel %vm87, %v270, -inf
    %294 = vmax.xlane.f32.xlu0 %v293
    %v295 = vpop.xlane.xlu0 %294
    %v296 = vsub.f32 %v184, %v274
    %v297 = vsub.f32 %v187, %v277
    %v298 = vsub.f32 %v190, %v280
    %v299 = vsub.f32 %v193, %v283
    %v300 = vsub.f32 %v261, %v286
    %v301 = vsub.f32 %v264, %v289
    %v302 = vsub.f32 %v267, %v292
    %v303 = vsub.f32 %v270, %v295
    %v304 = vmul.f32 %v296, 1.442695
    %v305 = vpow.pop %v304
    %v306 = vmul.f32 %v297, 1.442695
    %v307 = vpow.pop %v306
    %v308 = vmul.f32 %v298, 1.442695
    %v309 = vpow.pop %v308
    %v310 = vmul.f32 %v299, 1.442695
    %v311 = vpow.pop %v310
    %v312 = vmul.f32 %v300, 1.442695
    %v313 = vpow.pop %v312
    %v314 = vmul.f32 %v301, 1.442695
    %v315 = vpow.pop %v314
    %v316 = vmul.f32 %v302, 1.442695
    %v317 = vpow.pop %v316
    %v318 = vmul.f32 %v303, 1.442695
    %v319 = vpow.pop %v318
    %v320 = vsel %vm87, %v305, 0.0
    %321 = vadd.xlane.f32.xlu0 %v320
    %v322 = vpop.xlane.xlu0 %321
    %v323 = vsel %vm87, %v307, 0.0
    %324 = vadd.xlane.f32.xlu0 %v323
    %v325 = vpop.xlane.xlu0 %324
    %v326 = vsel %vm87, %v309, 0.0
    %327 = vadd.xlane.f32.xlu0 %v326
    %v328 = vpop.xlane.xlu0 %327
    %v329 = vsel %vm87, %v311, 0.0
    %330 = vadd.xlane.f32.xlu0 %v329
    %v331 = vpop.xlane.xlu0 %330
    %v332 = vsel %vm87, %v313, 0.0
    %333 = vadd.xlane.f32.xlu0 %v332
    %v334 = vpop.xlane.xlu0 %333
    %v335 = vsel %vm87, %v315, 0.0
    %336 = vadd.xlane.f32.xlu0 %v335
    %v337 = vpop.xlane.xlu0 %336
    %v338 = vsel %vm87, %v317, 0.0
    %339 = vadd.xlane.f32.xlu0 %v338
    %v340 = vpop.xlane.xlu0 %339
    %v341 = vsel %vm87, %v319, 0.0
    %342 = vadd.xlane.f32.xlu0 %v341
    %v343 = vpop.xlane.xlu0 %342
    %v344 = vmul.f32 %v322, 0.17677669
    %v345 = vmul.f32 %v325, 0.17677669
    %v346 = vmul.f32 %v328, 0.17677669
    %v347 = vmul.f32 %v331, 0.17677669
    %v348 = vmul.f32 %v334, 0.17677669
    %v349 = vmul.f32 %v337, 0.17677669
    %v350 = vmul.f32 %v340, 0.17677669
    %v351 = vmul.f32 %v343, 0.17677669
    %v352 = vrcp.pop %v344
    %v353 = vmul.f32 %v344, %v352
    %v354 = vsub.f32 1.0, %v353
    %v355 = vmul.f32 %v352, %v354
    %v356 = vadd.f32 %v352, %v355
    %vm357 = vweird.f32 %v344
    %vm358 = vweird.f32 %v352
    %vm359 = vmor %vm357, %vm358
    %v360 = vsel %vm359, %v352, %v356
    %v361 = vand.u32 2147483647, %v344
    %vm362 = vcmp.eq.f32.partialorder %v361, 8.507059e+37
    %v363 = vand.u32 %v344, 2147483648
    %v364 = vor.u32 1.1754944e-38, %v363
    %v365 = vsel %vm362, %v364, %v360
    %v366 = vrcp.pop %v345
    %v367 = vmul.f32 %v345, %v366
    %v368 = vsub.f32 1.0, %v367
    %v369 = vmul.f32 %v366, %v368
    %v370 = vadd.f32 %v366, %v369
    %vm371 = vweird.f32 %v345
    %vm372 = vweird.f32 %v366
    %vm373 = vmor %vm371, %vm372
    %v374 = vsel %vm373, %v366, %v370
    %v375 = vand.u32 2147483647, %v345
    %vm376 = vcmp.eq.f32.partialorder %v375, 8.507059e+37
    %v377 = vand.u32 %v345, 2147483648
    %v378 = vor.u32 1.1754944e-38, %v377
    %v379 = vsel %vm376, %v378, %v374
    %v380 = vrcp.pop %v346
    %v381 = vmul.f32 %v346, %v380
    %v382 = vsub.f32 1.0, %v381
    %v383 = vmul.f32 %v380, %v382
    %v384 = vadd.f32 %v380, %v383
    %vm385 = vweird.f32 %v346
    %vm386 = vweird.f32 %v380
    %vm387 = vmor %vm385, %vm386
    %v388 = vsel %vm387, %v380, %v384
    %v389 = vand.u32 2147483647, %v346
    %vm390 = vcmp.eq.f32.partialorder %v389, 8.507059e+37
    %v391 = vand.u32 %v346, 2147483648
    %v392 = vor.u32 1.1754944e-38, %v391
    %v393 = vsel %vm390, %v392, %v388
    %v394 = vrcp.pop %v347
    %v395 = vmul.f32 %v347, %v394
    %v396 = vsub.f32 1.0, %v395
    %v397 = vmul.f32 %v394, %v396
    %v398 = vadd.f32 %v394, %v397
    %vm399 = vweird.f32 %v347
    %vm400 = vweird.f32 %v394
    %vm401 = vmor %vm399, %vm400
    %v402 = vsel %vm401, %v394, %v398
    %v403 = vand.u32 2147483647, %v347
    %vm404 = vcmp.eq.f32.partialorder %v403, 8.507059e+37
    %v405 = vand.u32 %v347, 2147483648
    %v406 = vor.u32 1.1754944e-38, %v405
    %v407 = vsel %vm404, %v406, %v402
    %v408 = vrcp.pop %v348
    %v409 = vmul.f32 %v348, %v408
    %v410 = vsub.f32 1.0, %v409
    %v411 = vmul.f32 %v408, %v410
    %v412 = vadd.f32 %v408, %v411
    %vm413 = vweird.f32 %v348
    %vm414 = vweird.f32 %v408
    %vm415 = vmor %vm413, %vm414
    %v416 = vsel %vm415, %v408, %v412
    %v417 = vand.u32 2147483647, %v348
    %vm418 = vcmp.eq.f32.partialorder %v417, 8.507059e+37
    %v419 = vand.u32 %v348, 2147483648
    %v420 = vor.u32 1.1754944e-38, %v419
    %v421 = vsel %vm418, %v420, %v416
    %v422 = vrcp.pop %v349
    %v423 = vmul.f32 %v349, %v422
    %v424 = vsub.f32 1.0, %v423
    %v425 = vmul.f32 %v422, %v424
    %v426 = vadd.f32 %v422, %v425
    %vm427 = vweird.f32 %v349
    %vm428 = vweird.f32 %v422
    %vm429 = vmor %vm427, %vm428
    %v430 = vsel %vm429, %v422, %v426
    %v431 = vand.u32 2147483647, %v349
    %vm432 = vcmp.eq.f32.partialorder %v431, 8.507059e+37
    %v433 = vand.u32 %v349, 2147483648
    %v434 = vor.u32 1.1754944e-38, %v433
    %v435 = vsel %vm432, %v434, %v430
    %v436 = vrcp.pop %v350
    %v437 = vmul.f32 %v350, %v436
    %v438 = vsub.f32 1.0, %v437
    %v439 = vmul.f32 %v436, %v438
    %v440 = vadd.f32 %v436, %v439
    %vm441 = vweird.f32 %v350
    %vm442 = vweird.f32 %v436
    %vm443 = vmor %vm441, %vm442
    %v444 = vsel %vm443, %v436, %v440
    %v445 = vand.u32 2147483647, %v350
    %vm446 = vcmp.eq.f32.partialorder %v445, 8.507059e+37
    %v447 = vand.u32 %v350, 2147483648
    %v448 = vor.u32 1.1754944e-38, %v447
    %v449 = vsel %vm446, %v448, %v444
    %v450 = vrcp.pop %v351
    %v451 = vmul.f32 %v351, %v450
    %v452 = vsub.f32 1.0, %v451
    %v453 = vmul.f32 %v450, %v452
    %v454 = vadd.f32 %v450, %v453
    %vm455 = vweird.f32 %v351
    %vm456 = vweird.f32 %v450
    %vm457 = vmor %vm455, %vm456
    %v458 = vsel %vm457, %v450, %v454
    %v459 = vand.u32 2147483647, %v351
    %vm460 = vcmp.eq.f32.partialorder %v459, 8.507059e+37
    %v461 = vand.u32 %v351, 2147483648
    %v462 = vor.u32 1.1754944e-38, %v461
    %v463 = vsel %vm460, %v462, %v458
    %v464 = vmul.f32 %v305, %v365
    %v465 = vmul.f32 %v307, %v379
    %v466 = vmul.f32 %v309, %v393
    %v467 = vmul.f32 %v311, %v407
    %v468 = vmul.f32 %v313, %v421
    %v469 = vmul.f32 %v315, %v435
    %v470 = vmul.f32 %v317, %v449
    %v471 = vmul.f32 %v319, %v463
    %472 = vst.msk [vmem:[#allocation9] sm:$0xff] %vm87, %v464
    %473 = vst.msk [vmem:[#allocation9 + $0x8] sm:$0xff] %vm87, %v465
    %474 = vst.msk [vmem:[#allocation9 + $0x10] sm:$0xff] %vm87, %v466
    %475 = vst.msk [vmem:[#allocation9 + $0x18] sm:$0xff] %vm87, %v467
    %476 = vst.msk [vmem:[#allocation9 + $0x20] sm:$0xff] %vm87, %v468
    %477 = vst.msk [vmem:[#allocation9 + $0x28] sm:$0xff] %vm87, %v469
    %478 = vst.msk [vmem:[#allocation9 + $0x30] sm:$0xff] %vm87, %v470
    %479 = vst.msk [vmem:[#allocation9 + $0x38] sm:$0xff] %vm87, %v471
    %480 = vrot.lane.b32.xlu0 %v112, 64
    %v481 = vpop.permute.xlu0 %480
    %v482 = vsel %vm87, %v481, 0
    %v485 = vsel %vm87, %v464, 0
    %v488 = vsel %vm87, %v465, 0
    %v491 = vsel %vm87, %v466, 0
    %v494 = vsel %vm87, %v467, 0
    %496 = vmatpush.xpose.msra.mxu0 0.0
    %497 = vmatpush.xpose.msra.mxu0 0.0
    %498 = vmatpush.xpose.msra.mxu0 0.0
    %499 = vmatpush.xpose.msra.mxu0 0.0
    %500 = vmatpush.xpose.msra.mxu0 0.0
    %501 = vmatpush.xpose.msra.mxu0 0.0
    %502 = vmatpush.xpose.msra.mxu0 0.0
    %503 = vmatpush.xpose.msra.mxu0 0.0
    %504 = vmatpush.xpose.msra.mxu0 0.0
    %505 = vmatpush.xpose.msra.mxu0 0.0
    %506 = vmatpush.xpose.msra.mxu0 0.0
    %507 = vmatpush.xpose.msra.mxu0 0.0
    %508 = vmatpush.xpose.msra.mxu0 %v494
    %509 = vmatpush.xpose.msra.mxu0 %v491
    %510 = vmatpush.xpose.msra.mxu0 %v488
    %511 = vmatpush.xpose.msra.mxu0 %v485
    %512 = vmatmul.f32.gmra.mxu0 %v482
    %v513 = vpop.f32.mrf.mxu0
    %v514 = vadd.f32 0.0, %v513
    %515 = vdwg.mxu0
    %516 = vrot.lane.b32.xlu0 %v115, 64
    %v517 = vpop.permute.xlu0 %516
    %v518 = vsel %vm87, %v517, 0
    %v521 = vsel %vm87, %v468, 0
    %v524 = vsel %vm87, %v469, 0
    %v527 = vsel %vm87, %v470, 0
    %v530 = vsel %vm87, %v471, 0
    %532 = vmatpush.xpose.msra.mxu0 0.0
    %533 = vmatpush.xpose.msra.mxu0 0.0
    %534 = vmatpush.xpose.msra.mxu0 0.0
    %535 = vmatpush.xpose.msra.mxu0 0.0
    %536 = vmatpush.xpose.msra.mxu0 0.0
    %537 = vmatpush.xpose.msra.mxu0 0.0
    %538 = vmatpush.xpose.msra.mxu0 0.0
    %539 = vmatpush.xpose.msra.mxu0 0.0
    %540 = vmatpush.xpose.msra.mxu0 0.0
    %541 = vmatpush.xpose.msra.mxu0 0.0
    %542 = vmatpush.xpose.msra.mxu0 0.0
    %543 = vmatpush.xpose.msra.mxu0 0.0
    %544 = vmatpush.xpose.msra.mxu0 %v530
    %545 = vmatpush.xpose.msra.mxu0 %v527
    %546 = vmatpush.xpose.msra.mxu0 %v524
    %547 = vmatpush.xpose.msra.mxu0 %v521
    %548 = vmatmul.f32.gmra.mxu0 %v518
    %v549 = vpop.f32.mrf.mxu0
    %v550 = vadd.f32 0.0, %v549
    %551 = vdwg.mxu0
    %v552 = vld [vmem:[#allocation7] sm:$0xff]
    %v553 = vld [vmem:[#allocation7 + $0x8] sm:$0xff]
    %v554 = vld [vmem:[#allocation7 + $0x10] sm:$0xff]
    %v555 = vld [vmem:[#allocation7 + $0x18] sm:$0xff]
    %v556 = vld [vmem:[%s4] sm:$0x1]
    %v558 = vperm.slane %v556, 0
    %v561 = vsel %vm87, %v514, 0
    %v564 = vsel %vm87, %v550, 0
    %566 = vmatpush.msra.mxu0 0.0
    %567 = vmatpush.msra.mxu0 0.0
    %568 = vmatpush.msra.mxu0 0.0
    %569 = vmatpush.msra.mxu0 0.0
    %570 = vmatpush.msra.mxu0 0.0
    %571 = vmatpush.msra.mxu0 0.0
    %572 = vmatpush.msra.mxu0 0.0
    %573 = vmatpush.msra.mxu0 0.0
    %574 = vmatpush.msra.mxu0 0.0
    %575 = vmatpush.msra.mxu0 0.0
    %576 = vmatpush.msra.mxu0 0.0
    %577 = vmatpush.msra.mxu0 0.0
    %578 = vmatpush.msra.mxu0 %v555
    %579 = vmatpush.msra.mxu0 %v554
    %580 = vmatpush.msra.mxu0 %v553
    %581 = vmatpush.msra.mxu0 %v552
    %582 = vmatmul.f32.gmra.mxu0 %v561
    %v583 = vpop.f32.mrf.mxu0
    %v584 = vadd.f32 %v558, %v583
    %585 = vmatmul.f32.gmra.mxu0 %v564
    %v586 = vpop.f32.mrf.mxu0
    %v587 = vadd.f32 %v558, %v586
    %588 = vdwg.mxu0
    %v589 = vadd.f32 %v77, %v584
    %v590 = vadd.f32 %v78, %v587
    %v591 = vsel %vm87, %v589, 0.0
    %592 = vadd.xlane.f32.xlu0 %v591
    %v593 = vpop.xlane.xlu0 %592
    %v594 = vsel %vm87, %v590, 0.0
    %595 = vadd.xlane.f32.xlu0 %v594
    %v596 = vpop.xlane.xlu0 %595
    %v597 = vrcp.pop 32.0
    %v598 = vmul.f32 32.0, %v597
    %v599 = vsub.f32 1.0, %v598
    %v600 = vmul.f32 %v597, %v599
    %v601 = vadd.f32 %v597, %v600
    %vm602 = vweird.f32 %v597
    %v603 = vsel %vm602, %v597, %v601
    %v604 = vmul.f32 %v593, %v603
    %v605 = vmul.f32 %v596, %v603
    %v606 = vsub.f32 %v589, %v604
    %v607 = vsub.f32 %v590, %v605
    %v608 = vmul.f32 %v606, %v606
    %v609 = vmul.f32 %v607, %v607
    %v610 = vsel %vm87, %v608, 0.0
    %611 = vadd.xlane.f32.xlu0 %v610
    %v612 = vpop.xlane.xlu0 %611
    %v613 = vsel %vm87, %v609, 0.0
    %614 = vadd.xlane.f32.xlu0 %v613
    %v615 = vpop.xlane.xlu0 %614
    %v616 = vmul.f32 %v612, %v603
    %v617 = vmul.f32 %v615, %v603
    %v618 = vadd.f32 %v616, 1e-05
    %v619 = vadd.f32 %v617, 1e-05
    %v620 = vrsqrt.pop %v618
    %v621 = vmul.f32 %v620, %v618
    %v622 = vmul.f32 %v621, %v620
    %v623 = vmul.f32 0.5, %v622
    %v624 = vsub.f32 1.5, %v623
    %v625 = vmul.f32 %v620, %v624
    %vm626 = vweird.f32 %v618
    %vm627 = vweird.f32 %v620
    %vm628 = vmor %vm626, %vm627
    %v629 = vsel %vm628, %v620, %v625
    %v630 = vrsqrt.pop %v619
    %v631 = vmul.f32 %v630, %v619
    %v632 = vmul.f32 %v631, %v630
    %v633 = vmul.f32 0.5, %v632
    %v634 = vsub.f32 1.5, %v633
    %v635 = vmul.f32 %v630, %v634
    %vm636 = vweird.f32 %v619
    %vm637 = vweird.f32 %v630
    %vm638 = vmor %vm636, %vm637
    %v639 = vsel %vm638, %v630, %v635
    %v640 = vmul.f32 %v606, %v629
    %v641 = vmul.f32 %v607, %v639
    %v642 = vld [vmem:[%s5] sm:$0x1]
    %v644 = vperm.slane %v642, 0
    %v646 = vmul.f32 %v640, %v644
    %v647 = vmul.f32 %v641, %v644
    %v648 = vld [vmem:[%s6] sm:$0x1]
    %v650 = vperm.slane %v648, 0
    %v652 = vadd.f32 %v646, %v650
    %v653 = vadd.f32 %v647, %v650
    %654 = vst.msk [vmem:[#allocation8] sm:$0xff] %vm87, %v652
    %655 = vst.msk [vmem:[#allocation8 + $0x8] sm:$0xff] %vm87, %v653
    // Predicated region
    $region42: #{tpu_custom_call.1} parent=1 // pred_check
      _
    $region43: #{tpu_custom_call.1} parent=1 // pred_check_branch
      %657 = sbr.rel (0) target = $region45
    $region44: #{tpu_custom_call.1} parent=1 // pred_region
      %659 = vsyncadd [#allocation4], 0
      %s660 = sshll.u32 [#allocation8], 4
      %s661 = int_to_ptr.vmem [resolvable:$true] %s660
      %s662 = sshll.u32 %s7, 4
      %s663 = int_to_ptr.hbm [resolvable:$true] %s662
      %668 = dma.vmem_to_hbm [thread:$0]  %s661, 256, %s663, [#allocation4], 128, 128, 8
    $region45: #{tpu_custom_call.1} parent=1 // pred_fallthru
      _
    // Predicated region
    $region46: #{tpu_custom_call.1} parent=1 // pred_check
      _
    $region47: #{tpu_custom_call.1} parent=1 // pred_check_branch
      %670 = sbr.rel (0) target = $region49
    $region48: #{tpu_custom_call.1} parent=1 // pred_region
      %672 = vsyncadd [#allocation10], 0
      %s673 = sshll.u32 [#allocation9], 4
      %s674 = int_to_ptr.vmem [resolvable:$true] %s673
      %s675 = sshll.u32 %s8, 4
      %s676 = int_to_ptr.hbm [resolvable:$true] %s675
      %681 = dma.vmem_to_hbm [thread:$0]  %s674, 1024, %s676, [#allocation10], 128, 128, 8
    $region49: #{tpu_custom_call.1} parent=1 // pred_fallthru
      _
    // Predicated region
    $region50: #{tpu_custom_call.1} parent=1 // pred_check
      _
    $region51: #{tpu_custom_call.1} parent=1 // pred_check_branch
      %683 = sbr.rel (0) target = $region53
    $region52: #{tpu_custom_call.1} parent=1 // pred_region
      %685 = dma.done [#allocation4], 256
    $region53: #{tpu_custom_call.1} parent=1 // pred_fallthru
      _
    // Predicated region
    $region54: #{tpu_custom_call.1} parent=1 // pred_check
      _
    $region55: #{tpu_custom_call.1} parent=1 // pred_check_branch
      %687 = sbr.rel (0) target = $region57
    $region56: #{tpu_custom_call.1} parent=1 // pred_region
      %689 = dma.done [#allocation10], 1024
    $region57: #{tpu_custom_call.1} parent=1 // pred_fallthru
      _
    %690 = vsyncpa [#allocation3], 1
    %691 = vsyncpa [#allocation6], 1
    %692 = vsyncpa [#allocation4], 1
    %693 = vsyncpa [#allocation10], 1

</llo_original>
